<compile_context>
chip_gen: v7x
topology: tpu7x:2x2x1
jax: 0.10.0
libtpu: 0.0.40
codegen_flags: <defaults>
</compile_context>

<pallas_src>
import functools
import numpy as np
import jax
import jax.numpy as jnp
from jax.experimental import pallas as pl
from jax.experimental.pallas import tpu as pltpu


# ----------------------------------------------------------------------------
# Host-side (init-time) ERP sampling-grid construction (pure numpy, matches
# the PyTorch create_erp_coor math).
# ----------------------------------------------------------------------------
def _rotation_matrix(rad, ax):
    ax = np.array(ax, dtype=np.float64)
    ax = ax / np.sqrt((ax ** 2).sum())
    c = np.cos(rad)
    R = np.diag([c, c, c])
    R = R + np.outer(ax, ax) * (1.0 - c)
    axs = ax * np.sin(rad)
    R = R + np.array([[0.0, -axs[2], axs[1]],
                      [axs[2], 0.0, -axs[0]],
                      [-axs[1], axs[0], 0.0]])
    return R


def _create_perspective_xyz(h_fov, v_fov, u, v, in_rot, out_hw):
    out = np.ones((out_hw[0], out_hw[1], 3), dtype=np.float64)
    x_max = np.tan(h_fov / 2.0)
    y_max = np.tan(v_fov / 2.0)
    x_rng = np.linspace(-x_max, x_max, num=out_hw[1], dtype=np.float64)
    y_rng = np.linspace(-y_max, y_max, num=out_hw[0], dtype=np.float64)
    out[..., :2] = np.stack(np.meshgrid(x_rng, -y_rng), axis=-1)
    Rx = _rotation_matrix(v, [1.0, 0.0, 0.0])
    Ry = _rotation_matrix(u, [0.0, 1.0, 0.0])
    Ri = _rotation_matrix(in_rot, np.array([0.0, 0.0, 1.0]).dot(Rx).dot(Ry))
    return out.dot(Rx).dot(Ry).dot(Ri)


def _xyz2uv(xyz):
    x, y, z = xyz[..., 0], xyz[..., 1], xyz[..., 2]
    u = np.arctan2(x, z)
    c = np.sqrt(x ** 2 + z ** 2)
    v = np.arctan2(y, c)
    return np.stack([u, v], axis=-1)


def _uv2coor(uv, in_hw):
    h, w = in_hw
    u, v = uv[..., 0], uv[..., 1]
    coor_x = (u / (2.0 * np.pi) + 0.5) * w - 0.5
    coor_y = (-v / np.pi + 0.5) * h - 0.5
    return np.stack([coor_x, coor_y], axis=-1)


def create_erp_coor(fov_deg, u_deg, v_deg, in_rot_deg, in_hw, out_hw):
    """Returns normalized sampling grid coor_xy with shape [1, h_out, w_out, 2]."""
    h, w = in_hw
    h_fov, v_fov = fov_deg[0] * np.pi / 180.0, fov_deg[1] * np.pi / 180.0
    in_rot = in_rot_deg * np.pi / 180.0
    u = -u_deg * np.pi / 180.0
    v = v_deg * np.pi / 180.0
    xyz = _create_perspective_xyz(h_fov, v_fov, u, v, in_rot, out_hw)
    uv = _xyz2uv(xyz)
    coor_xy = _uv2coor(uv, (h, w)).astype(np.float32)
    coor_xy[..., 0] = coor_xy[..., 0] / (w - 1) * 2.0 - 1.0
    coor_xy[..., 1] = coor_xy[..., 1] / (h - 1) * 2.0 - 1.0
    return coor_xy[None]  # [1, h_out, w_out, 2]


# ----------------------------------------------------------------------------
# Pallas kernels
# ----------------------------------------------------------------------------
def _round_up(x, m):
    return ((x + m - 1) // m) * m


def _e2p_single_k_kernel(compute_dtype, ks_ref, kc_ref, img_ref, interp_ref, out_ref):
    # Whole per-tile band fits one K tile: no accumulator / no zero-init pass.
    del ks_ref, kc_ref
    out_ref[...] = jnp.dot(img_ref[...].astype(compute_dtype), interp_ref[...],
                           preferred_element_type=jnp.float32).astype(out_ref.dtype)


def _e2p_banded_kernel(compute_dtype, ks_ref, kc_ref, img_ref, interp_ref,
                       out_ref, acc_ref):
    del ks_ref
    j = pl.program_id(1)
    k = pl.program_id(2)

    @pl.when(k == 0)
    def _init():
        acc_ref[...] = jnp.zeros_like(acc_ref)

    # Skip K tiles beyond this output tile's band (their interp slabs are zero
    # anyway; the index_maps also clamp so no fresh DMA is issued for them).
    @pl.when(k < kc_ref[j])
    def _accumulate():
        acc_ref[...] += jnp.dot(img_ref[...].astype(compute_dtype), interp_ref[...],
                                preferred_element_type=jnp.float32)

    @pl.when(k == pl.num_programs(2) - 1)
    def _finalize():
        out_ref[...] = acc_ref[...].astype(out_ref.dtype)


class E2P:
    """Pallas TPU version of the PyTorch E2P layer (bilinear mode)."""

    def __init__(self, fov_deg, u_deg, v_deg, in_rot_deg, in_hw, out_hw,
                 mode="bilinear", compute_dtype=jnp.bfloat16,
                 tile_m=256, tile_n=1024, tile_k=2048):
        assert mode == "bilinear", "only bilinear grid_sample is implemented"
        self.in_hw = tuple(in_hw)
        self.out_hw = tuple(out_hw)
        self.compute_dtype = np.dtype(compute_dtype)
        self._tile_m = int(tile_m)

        H, W = self.in_hw
        ho, wo = self.out_hw
        P = ho * wo
        K = H * W

        coor_xy = create_erp_coor(fov_deg, u_deg, v_deg, in_rot_deg, in_hw, out_hw)
        self.coor_xy = coor_xy  # [1, ho, wo, 2] (kept for reference checking)

        # --- static bilinear structure (hoisted out of the kernel) ----------
        gx = coor_xy[0, :, :, 0].reshape(-1).astype(np.float64)
        gy = coor_xy[0, :, :, 1].reshape(-1).astype(np.float64)
        # un-normalize (align_corners=True) + clamp (padding_mode='border')
        ix = np.clip((gx + 1.0) * 0.5 * (W - 1), 0.0, W - 1)
        iy = np.clip((gy + 1.0) * 0.5 * (H - 1), 0.0, H - 1)
        x0 = np.floor(ix).astype(np.int64)
        y0 = np.floor(iy).astype(np.int64)
        wx = ix - x0
        wy = iy - y0
        x1 = np.minimum(x0 + 1, W - 1)
        y1 = np.minimum(y0 + 1, H - 1)

        # --- tile sizes (lane multiples of 128; prefer K tiles = whole rows) -
        tn = min(int(tile_n), _round_up(P, 128))
        max_tk = min(int(tile_k), _round_up(K, 128))
        if W % 128 == 0 and W <= max_tk:
            tk = (max_tk // W) * W          # K tiles aligned to whole ERP rows
        else:
            tk = max_tk
        P_pad = _round_up(P, tn)
        K_pad = _round_up(K, tk)
        nj = P_pad // tn
        K_tiles = K_pad // tk

        # --- per-output-tile K band (units of K tiles) -----------------------
        corners_k = np.stack([y0 * W + x0, y0 * W + x1,
                              y1 * W + x0, y1 * W + x1], axis=0)   # (4, P)
        cols = np.arange(P, dtype=np.int64)
        jt = cols // tn
        cloc = cols % tn
        kmin = np.full(nj, K, dtype=np.int64)
        kmax = np.zeros(nj, dtype=np.int64)
        np.minimum.at(kmin, jt, corners_k.min(axis=0))
        np.maximum.at(kmax, jt, corners_k.max(axis=0))

        raw_start = kmin // tk
        raw_count = (kmax // tk) - raw_start + 1
        band_kt = int(raw_count.max())
        start_tile = np.minimum(raw_start, K_tiles - band_kt)   # keep slab in range
        count_tile = (kmax // tk) - start_tile + 1
        assert np.all(start_tile >= 0) and np.all(count_tile <= band_kt)

        # --- block-compressed interpolation weights: (nj, band_kt, tk, tn) ---
        # Only the touched band per output tile is stored; np.add.at also sums
        # duplicated corners at the image border (x0==x1 / y0==y1) correctly.
        interp_blocks = np.zeros((nj, band_kt, tk, tn), dtype=np.float32)
        start_px = start_tile[jt] * tk
        for ky, kx, w in ((y0, x0, (1.0 - wx) * (1.0 - wy)),
                          (y0, x1, wx * (1.0 - wy)),
                          (y1, x0, (1.0 - wx) * wy),
                          (y1, x1, wx * wy)):
            rel = ky * W + kx - start_px
            np.add.at(interp_blocks, (jt, rel // tk, rel % tk, cloc),
                      w.astype(np.float32))

        self._tn, self._tk, self._band_kt = tn, tk, band_kt
        self._P, self._P_pad = P, P_pad
        self._K, self._K_pad = K, K_pad
        self._nj, self._K_tiles = nj, K_tiles
        self._kstart = jnp.asarray(start_tile.astype(np.int32))
        self._kcount = jnp.asarray(count_tile.astype(np.int32))
        self._interp = jnp.asarray(interp_blocks, dtype=self.compute_dtype)

    def __call__(self, e_img):
        N, C, H, W = e_img.shape
        assert (H, W) == self.in_hw
        ho, wo = self.out_hw
        M = N * C
        P, P_pad = self._P, self._P_pad
        K, K_pad = self._K, self._K_pad
        tn, tk, band_kt, nj = self._tn, self._tk, self._band_kt, self._nj
        cdt = self.compute_dtype

        img_dtype = np.dtype(e_img.dtype)
        sub = 8 if img_dtype.itemsize >= 4 else 16
        tm = min(self._tile_m, _round_up(M, sub))
        M_pad = _round_up(M, tm)
        ni = M_pad // tm

        # Glue: reshape is free (contiguous); cast happens per-tile inside the
        # kernel, so the only copy is a zero-pad when shapes aren't tile-exact.
        img = e_img.reshape(M, K)
        if M_pad != M or K_pad != K:
            img = jnp.pad(img, ((0, M_pad - M), (0, K_pad - K)))

        itemsize_img = img_dtype.itemsize
        itemsize_w = cdt.itemsize
        itemsize_out = img_dtype.itemsize
        cost = pl.CostEstimate(
            flops=2 * M_pad * band_kt * tk * P_pad,
            transcendentals=0,
            bytes_accessed=(ni * nj * band_kt * tk * tn * itemsize_w   # interp, re-read per i-tile
                            + nj * M_pad * band_kt * tk * itemsize_img  # img band, re-read per j-tile
                            + M_pad * P_pad * itemsize_out))

        # Explicit scoped-VMEM budget: double-buffered img/interp/out + f32 acc.
        vmem_needed = (2 * tm * tk * itemsize_img + 2 * tk * tn * itemsize_w
                       + 2 * tm * tn * itemsize_out + tm * tn * 4)
        vmem_limit = int(min(max(2 * vmem_needed, 16 * 1024 * 1024),
                             64 * 1024 * 1024))

        if band_kt == 1:
            kernel = functools.partial(_e2p_single_k_kernel, cdt)
            grid = (ni, nj)
            in_specs = [
                pl.BlockSpec((tm, tk), lambda i, j, ks, kc: (i, ks[j])),
                pl.BlockSpec((pl.Squeezed(), pl.Squeezed(), tk, tn),
                             lambda i, j, ks, kc: (j, 0, 0, 0)),
            ]
            out_spec = pl.BlockSpec((tm, tn), lambda i, j, ks, kc: (i, j))
            scratch = []
            dims = ("parallel", "parallel")
        else:
            kernel = functools.partial(_e2p_banded_kernel, cdt)
            grid = (ni, nj, band_kt)
            in_specs = [
                pl.BlockSpec(
                    (tm, tk),
                    lambda i, j, k, ks, kc: (i, ks[j] + jnp.minimum(k, kc[j] - 1))),
                pl.BlockSpec(
                    (pl.Squeezed(), pl.Squeezed(), tk, tn),
                    lambda i, j, k, ks, kc: (j, jnp.minimum(k, kc[j] - 1), 0, 0)),
            ]
            out_spec = pl.BlockSpec((tm, tn), lambda i, j, k, ks, kc: (i, j))
            scratch = [pltpu.VMEM((tm, tn), jnp.float32)]
            dims = ("parallel", "parallel", "arbitrary")

        out_pad = pl.pallas_call(
            kernel,
            out_shape=jax.ShapeDtypeStruct((M_pad, P_pad), e_img.dtype),
            grid_spec=pltpu.PrefetchScalarGridSpec(
                num_scalar_prefetch=2,
                grid=grid,
                in_specs=in_specs,
                out_specs=out_spec,
                scratch_shapes=scratch,
            ),
            compiler_params=pltpu.CompilerParams(
                dimension_semantics=dims,
                vmem_limit_bytes=vmem_limit),
            cost_estimate=cost,
        )(self._kstart, self._kcount, img, self._interp)

        return out_pad[:M, :P].reshape(N, C, ho, wo)


# ----------------------------------------------------------------------------
# Pure-numpy grid_sample reference (bilinear, align_corners, border).
# ----------------------------------------------------------------------------
def _grid_sample_ref(e_img, coor_xy):
    e_img = np.asarray(e_img)
    N, C, H, W = e_img.shape
    gx = coor_xy[0, :, :, 0]
    gy = coor_xy[0, :, :, 1]
    ix = np.clip((gx + 1.0) * 0.5 * (W - 1), 0.0, W - 1)
    iy = np.clip((gy + 1.0) * 0.5 * (H - 1), 0.0, H - 1)
    x0 = np.floor(ix).astype(np.int32)
    y0 = np.floor(iy).astype(np.int32)
    wx = ix - x0
    wy = iy - y0
    x1 = np.minimum(x0 + 1, W - 1)
    y1 = np.minimum(y0 + 1, H - 1)
    out = ((1 - wx) * (1 - wy) * e_img[:, :, y0, x0]
           + wx * (1 - wy) * e_img[:, :, y0, x1]
           + (1 - wx) * wy * e_img[:, :, y1, x0]
           + wx * wy * e_img[:, :, y1, x1])
    return out


if __name__ == "__main__":
    # Small deterministic example: ERP input 16x32, perspective output 8x8.
    N, C = 2, 4
    in_hw = (16, 32)
    out_hw = (8, 8)

    key = jax.random.PRNGKey(0)
    e_img = jax.random.normal(key, (N, C, in_hw[0], in_hw[1]), dtype=jnp.float32)

    # f32-weight path: tight numerical check against the grid_sample reference.
    layer_f32 = E2P(fov_deg=(90.0, 90.0), u_deg=30.0, v_deg=15.0,
                    in_rot_deg=0.0, in_hw=in_hw, out_hw=out_hw,
                    compute_dtype=jnp.float32)
    pers_f32 = jax.block_until_ready(layer_f32(e_img))
    assert pers_f32.shape == (N, C, out_hw[0], out_hw[1])
    ref = _grid_sample_ref(np.asarray(e_img), layer_f32.coor_xy)
    np.testing.assert_allclose(np.asarray(pers_f32), ref, atol=1e-4, rtol=1e-4)

    # Default bf16-weight / f32-accumulate path (full-rate MXU + half the HBM
    # stream): loose check (bilinear weights sum to 1 per column).
    layer_bf16 = E2P(fov_deg=(90.0, 90.0), u_deg=30.0, v_deg=15.0,
                     in_rot_deg=0.0, in_hw=in_hw, out_hw=out_hw)
    pers_bf16 = jax.block_until_ready(layer_bf16(e_img))
    np.testing.assert_allclose(np.asarray(pers_bf16), ref, atol=5e-2, rtol=5e-2)

    # Force the multi-K-tile banded/accumulator path (small K tiles, two output
    # tiles with different ERP bands) and check it too.
    out_hw2 = (16, 16)
    layer_band = E2P(fov_deg=(90.0, 90.0), u_deg=30.0, v_deg=15.0,
                     in_rot_deg=0.0, in_hw=in_hw, out_hw=out_hw2,
                     compute_dtype=jnp.float32, tile_n=128, tile_k=128)
    pers_band = jax.block_until_ready(layer_band(e_img))
    ref2 = _grid_sample_ref(np.asarray(e_img), layer_band.coor_xy)
    np.testing.assert_allclose(np.asarray(pers_band), ref2, atol=1e-4, rtol=1e-4)

    print("KERNEL_OK")
</pallas_src>

<mosaic_0001>
module attributes {stable_mosaic.version = 11 : i64} {
  func.func @_e2p_single_k_kernel(%arg0: i32, %arg1: i32, %arg2: memref<1xi32, #tpu.memory_space<smem>>, %arg3: memref<1xi32, #tpu.memory_space<smem>>, %arg4: memref<8x512xf32, #tpu.memory_space<vmem>>, %arg5: memref<1x1x512x128xf32, #tpu.memory_space<vmem>>, %arg6: memref<8x128xf32, #tpu.memory_space<vmem>>) attributes {dimension_semantics = [#tpu.dimension_semantics<parallel>, #tpu.dimension_semantics<parallel>], iteration_bounds = array<i64: 1, 1>, scalar_prefetch = 2 : i64, scratch_operands = 0 : i64, tpu.core_type = #tpu.core_type<tc>, window_params = [{transform_indices = @transform_0, window_bounds = array<i64: 8, 512>}, {transform_indices = @transform_1, window_bounds = array<i64: 1, 1, 512, 128>}, {transform_indices = @transform_2, window_bounds = array<i64: 8, 128>}]} {
    %c0 = arith.constant 0 : index
    %c0_0 = arith.constant 0 : index
    %0 = vector.load %arg4[%c0, %c0_0] : memref<8x512xf32, #tpu.memory_space<vmem>>, vector<8x512xf32>
    %c0_1 = arith.constant 0 : index
    %c0_2 = arith.constant 0 : index
    %c0_3 = arith.constant 0 : index
    %c0_4 = arith.constant 0 : index
    %1 = vector.load %arg5[%c0_1, %c0_2, %c0_3, %c0_4] : memref<1x1x512x128xf32, #tpu.memory_space<vmem>>, vector<1x1x512x128xf32>
    %2 = vector.shape_cast %1 : vector<1x1x512x128xf32> to vector<512x128xf32>
    %cst = arith.constant dense<0.000000e+00> : vector<8x128xf32>
    %3 = tpu.matmul %0, %2, %cst {dimension_numbers = #tpu.dot_dimension_numbers<[1], [0], [0], [1], [0, 0, 1, 1], [], []>} : vector<8x512xf32>, vector<512x128xf32>, vector<8x128xf32> -> vector<8x128xf32>
    %c0_5 = arith.constant 0 : index
    %c0_6 = arith.constant 0 : index
    %4 = vector.load %arg6[%c0_5, %c0_6] : memref<8x128xf32, #tpu.memory_space<vmem>>, vector<8x128xf32>
    tpu.vector_store %arg6[%c0_5, %c0_6], %3 {strides = array<i32>} : memref<8x128xf32, #tpu.memory_space<vmem>>, vector<8x128xf32>,
    return
  }
  func.func @transform_0(%arg0: i32, %arg1: i32, %arg2: memref<1xi32, #tpu.memory_space<smem>>, %arg3: memref<1xi32, #tpu.memory_space<smem>>) -> (i32, i32) {
    %0 = arith.index_cast %arg1 : i32 to index
    %1 = memref.load %arg2[%0] : memref<1xi32, #tpu.memory_space<smem>>
    %c0_i32 = arith.constant 0 : i32
    return %arg0, %1 : i32, i32
  }
  func.func @transform_1(%arg0: i32, %arg1: i32, %arg2: memref<1xi32, #tpu.memory_space<smem>>, %arg3: memref<1xi32, #tpu.memory_space<smem>>) -> (i32, i32, i32, i32) {
    %c0_i32 = arith.constant 0 : i32
    %c0_i32_0 = arith.constant 0 : i32
    %c0_i32_1 = arith.constant 0 : i32
    %c0_i32_2 = arith.constant 0 : i32
    return %arg1, %c0_i32, %c0_i32_0, %c0_i32_1 : i32, i32, i32, i32
  }
  func.func @transform_2(%arg0: i32, %arg1: i32, %arg2: memref<1xi32, #tpu.memory_space<smem>>, %arg3: memref<1xi32, #tpu.memory_space<smem>>) -> (i32, i32) {
    %c0_i32 = arith.constant 0 : i32
    return %arg0, %arg1 : i32, i32
  }
}

</mosaic_0001>

<llo_original>
// kernel: tpu_custom_call.1
$region0: #{tpu_custom_call.1}
  #allocation0 [shape = 'u32[]', space=smem, size = 0x4, offset = 0x4, fixed_abs, tag = 'smem constant byte address 0x4 - core index']
  #allocation1 [shape = 'u32[144,128]{1,0:T(1,128)}', space=vmem, size = 0x12000, scoped, tag = 'internal scratch']
  #allocation2 [shape = 's32[1]{0}', space=sflag, size = 0x4, scoped, tag = 'scoped memory for tpu_custom_call.1']
  #allocation3 [shape = 's32[1]{0:T(128)S(6)}', space=smem, size = 0x200, scoped, tag = 'prefetched SMEM operand 0']
  #allocation4 [shape = 's32[1]{0:T(128)S(6)}', space=smem, size = 0x200, scoped, tag = 'prefetched SMEM operand 1']
  %s0 = inlined_call_operand.<no memory space> [shape: s32[1], index: 0, kind: input, shape index: {}]
  %s1 = inlined_call_operand.<no memory space> [shape: s32[1], index: 1, kind: input, shape index: {}]
  %s2 = inlined_call_operand.hbm [shape: f32[8,512], index: 2, kind: input, shape index: {}]
  %s3 = inlined_call_operand.hbm [shape: f32[1,1,512,128], index: 3, kind: input, shape index: {}]
  %s4 = inlined_call_operand.hbm [shape: f32[8,128], index: 4, kind: output, shape index: {}]
  %s5 = sld [smem:[#allocation0]]
  $region26: #{tpu_custom_call.1} parent=0
    _
  %s7 = ssub.s32 1, %s5
  %s8 = scalar_select 0, %s7, %s5
  %9 = sst [smem:[#allocation3]] %s0
  %10 = sst [smem:[#allocation4]] %s1
  $region1: #{tpu_custom_call.1} parent=0
    #allocation5 [shape = 'u8[16384]{0}', space=vmem, size = 0x4000, scoped, tag = 'input window, operand 2, single buffered']
    #allocation6 [shape = 's32[1]{0}', space=sflag, size = 0x4, scoped, tag = 'scoped memory for tpu_custom_call.1']
    #allocation7 [shape = 's32[1]{0}', space=sflag, size = 0x4, scoped, tag = 'scoped memory for tpu_custom_call.1']
    #allocation8 [shape = 'u8[262144]{0}', space=vmem, size = 0x40000, scoped, tag = 'input window, operand 3, single buffered']
    #allocation9 [shape = 's32[1]{0}', space=sflag, size = 0x4, scoped, tag = 'scoped memory for tpu_custom_call.1']
    #allocation10 [shape = 'u8[4096]{0}', space=vmem, size = 0x1000, scoped, tag = 'output window, operand 0, single buffered']
    %11 = vsyncpa [#allocation6], 0
    %12 = vsyncpa [#allocation9], 0
    %13 = vsyncpa [#allocation7], 0
    // Predicated region
    $region2: #{tpu_custom_call.1} parent=1 // pred_check
      _
    $region3: #{tpu_custom_call.1} parent=1 // pred_check_branch
      %15 = sbr.rel (0) target = $region5
    $region4: #{tpu_custom_call.1} parent=1 // pred_region
      %s16 = sld [smem:[#allocation3]]
      %s17 = smul.u32 4, %s16
      %s19 = ssub.s32 512, 512
      %20 = vsyncadd [#allocation6], %s19
      %s21 = smul.addr %s17, 128
      %s22 = scalar_lea.hbm %s2, %s21
      %s24 = sshll.u32 [#allocation5], 4
      %s25 = int_to_ptr.vmem [resolvable:$true] %s24
      %27 = dma.hbm_to_vmem [thread:$0]  %s22, 512, %s25, [#allocation6]
    $region5: #{tpu_custom_call.1} parent=1 // pred_fallthru
      _
    // Predicated region
    $region6: #{tpu_custom_call.1} parent=1 // pred_check
      _
    $region7: #{tpu_custom_call.1} parent=1 // pred_check_branch
      %29 = sbr.rel (0) target = $region9
    $region8: #{tpu_custom_call.1} parent=1 // pred_region
      %s31 = ssub.s32 8192, 8192
      %32 = vsyncadd [#allocation9], %s31
      %s33 = sshll.u32 [#allocation8], 4
      %s34 = int_to_ptr.vmem [resolvable:$true] %s33
      %39 = dma.hbm_to_vmem [thread:$0]  %s3, 8192, %s34, [#allocation9], 128, 128, 8
    $region9: #{tpu_custom_call.1} parent=1 // pred_fallthru
      _
    // Predicated region
    $region10: #{tpu_custom_call.1} parent=1 // pred_check
      _
    $region11: #{tpu_custom_call.1} parent=1 // pred_check_branch
      %41 = sbr.rel (0) target = $region13
    $region12: #{tpu_custom_call.1} parent=1 // pred_region
      %42 = dma.done [#allocation6], 512
    $region13: #{tpu_custom_call.1} parent=1 // pred_fallthru
      _
    // Predicated region
    $region14: #{tpu_custom_call.1} parent=1 // pred_check
      _
    $region15: #{tpu_custom_call.1} parent=1 // pred_check_branch
      %44 = sbr.rel (0) target = $region17
    $region16: #{tpu_custom_call.1} parent=1 // pred_region
      %45 = dma.done [#allocation9], 8192
    $region17: #{tpu_custom_call.1} parent=1 // pred_fallthru
      _
    %s46 = sld [smem:[#allocation3]]
    %s47 = smul.u32 4, %s46
    %v48 = vld [vmem:[#allocation5] sm:$0xff]
    %v49 = vld [vmem:[#allocation5 + $0x8] sm:$0xff]
    %v50 = vld [vmem:[#allocation5 + $0x10] sm:$0xff]
    %v51 = vld [vmem:[#allocation5 + $0x18] sm:$0xff]
    %v52 = vld [vmem:[#allocation8] sm:$0xff]
    %v53 = vld [vmem:[#allocation8 + $0x8] sm:$0xff]
    %v54 = vld [vmem:[#allocation8 + $0x10] sm:$0xff]
    %v55 = vld [vmem:[#allocation8 + $0x18] sm:$0xff]
    %v56 = vld [vmem:[#allocation8 + $0x20] sm:$0xff]
    %v57 = vld [vmem:[#allocation8 + $0x28] sm:$0xff]
    %v58 = vld [vmem:[#allocation8 + $0x30] sm:$0xff]
    %v59 = vld [vmem:[#allocation8 + $0x38] sm:$0xff]
    %v60 = vld [vmem:[#allocation8 + $0x40] sm:$0xff]
    %v61 = vld [vmem:[#allocation8 + $0x48] sm:$0xff]
    %v62 = vld [vmem:[#allocation8 + $0x50] sm:$0xff]
    %v63 = vld [vmem:[#allocation8 + $0x58] sm:$0xff]
    %v64 = vld [vmem:[#allocation8 + $0x60] sm:$0xff]
    %v65 = vld [vmem:[#allocation8 + $0x68] sm:$0xff]
    %v66 = vld [vmem:[#allocation8 + $0x70] sm:$0xff]
    %v67 = vld [vmem:[#allocation8 + $0x78] sm:$0xff]
    %v68 = vld [vmem:[#allocation8 + $0x80] sm:$0xff]
    %v69 = vld [vmem:[#allocation8 + $0x88] sm:$0xff]
    %v70 = vld [vmem:[#allocation8 + $0x90] sm:$0xff]
    %v71 = vld [vmem:[#allocation8 + $0x98] sm:$0xff]
    %v72 = vld [vmem:[#allocation8 + $0xa0] sm:$0xff]
    %v73 = vld [vmem:[#allocation8 + $0xa8] sm:$0xff]
    %v74 = vld [vmem:[#allocation8 + $0xb0] sm:$0xff]
    %v75 = vld [vmem:[#allocation8 + $0xb8] sm:$0xff]
    %v76 = vld [vmem:[#allocation8 + $0xc0] sm:$0xff]
    %v77 = vld [vmem:[#allocation8 + $0xc8] sm:$0xff]
    %v78 = vld [vmem:[#allocation8 + $0xd0] sm:$0xff]
    %v79 = vld [vmem:[#allocation8 + $0xd8] sm:$0xff]
    %v80 = vld [vmem:[#allocation8 + $0xe0] sm:$0xff]
    %v81 = vld [vmem:[#allocation8 + $0xe8] sm:$0xff]
    %v82 = vld [vmem:[#allocation8 + $0xf0] sm:$0xff]
    %v83 = vld [vmem:[#allocation8 + $0xf8] sm:$0xff]
    %v84 = vld [vmem:[#allocation8 + $0x100] sm:$0xff]
    %v85 = vld [vmem:[#allocation8 + $0x108] sm:$0xff]
    %v86 = vld [vmem:[#allocation8 + $0x110] sm:$0xff]
    %v87 = vld [vmem:[#allocation8 + $0x118] sm:$0xff]
    %v88 = vld [vmem:[#allocation8 + $0x120] sm:$0xff]
    %v89 = vld [vmem:[#allocation8 + $0x128] sm:$0xff]
    %v90 = vld [vmem:[#allocation8 + $0x130] sm:$0xff]
    %v91 = vld [vmem:[#allocation8 + $0x138] sm:$0xff]
    %v92 = vld [vmem:[#allocation8 + $0x140] sm:$0xff]
    %v93 = vld [vmem:[#allocation8 + $0x148] sm:$0xff]
    %v94 = vld [vmem:[#allocation8 + $0x150] sm:$0xff]
    %v95 = vld [vmem:[#allocation8 + $0x158] sm:$0xff]
    %v96 = vld [vmem:[#allocation8 + $0x160] sm:$0xff]
    %v97 = vld [vmem:[#allocation8 + $0x168] sm:$0xff]
    %v98 = vld [vmem:[#allocation8 + $0x170] sm:$0xff]
    %v99 = vld [vmem:[#allocation8 + $0x178] sm:$0xff]
    %v100 = vld [vmem:[#allocation8 + $0x180] sm:$0xff]
    %v101 = vld [vmem:[#allocation8 + $0x188] sm:$0xff]
    %v102 = vld [vmem:[#allocation8 + $0x190] sm:$0xff]
    %v103 = vld [vmem:[#allocation8 + $0x198] sm:$0xff]
    %v104 = vld [vmem:[#allocation8 + $0x1a0] sm:$0xff]
    %v105 = vld [vmem:[#allocation8 + $0x1a8] sm:$0xff]
    %v106 = vld [vmem:[#allocation8 + $0x1b0] sm:$0xff]
    %v107 = vld [vmem:[#allocation8 + $0x1b8] sm:$0xff]
    %v108 = vld [vmem:[#allocation8 + $0x1c0] sm:$0xff]
    %v109 = vld [vmem:[#allocation8 + $0x1c8] sm:$0xff]
    %v110 = vld [vmem:[#allocation8 + $0x1d0] sm:$0xff]
    %v111 = vld [vmem:[#allocation8 + $0x1d8] sm:$0xff]
    %v112 = vld [vmem:[#allocation8 + $0x1e0] sm:$0xff]
    %v113 = vld [vmem:[#allocation8 + $0x1e8] sm:$0xff]
    %v114 = vld [vmem:[#allocation8 + $0x1f0] sm:$0xff]
    %v115 = vld [vmem:[#allocation8 + $0x1f8] sm:$0xff]
    %116 = vmatprep.subr.mxu0 0.0
    %117 = vmatpush1.msra.mxu0 %v52
    %118 = vmatprep.subr.mxu0 0.0
    %119 = vmatpush1.msra.mxu0 %v53
    %120 = vmatprep.subr.mxu0 0.0
    %121 = vmatpush1.msra.mxu0 %v54
    %122 = vmatprep.subr.mxu0 0.0
    %123 = vmatpush1.msra.mxu0 %v55
    %124 = vmatprep.subr.mxu0 0.0
    %125 = vmatpush1.msra.mxu0 %v56
    %126 = vmatprep.subr.mxu0 0.0
    %127 = vmatpush1.msra.mxu0 %v57
    %128 = vmatprep.subr.mxu0 0.0
    %129 = vmatpush1.msra.mxu0 %v58
    %130 = vmatprep.subr.mxu0 0.0
    %131 = vmatpush1.msra.mxu0 %v59
    %132 = vmatprep.subr.mxu0 0.0
    %133 = vmatpush1.msra.mxu0 %v60
    %134 = vmatprep.subr.mxu0 0.0
    %135 = vmatpush1.msra.mxu0 %v61
    %136 = vmatprep.subr.mxu0 0.0
    %137 = vmatpush1.msra.mxu0 %v62
    %138 = vmatprep.subr.mxu0 0.0
    %139 = vmatpush1.msra.mxu0 %v63
    %140 = vmatprep.subr.mxu0 0.0
    %141 = vmatpush1.msra.mxu0 %v64
    %142 = vmatprep.subr.mxu0 0.0
    %143 = vmatpush1.msra.mxu0 %v65
    %144 = vmatprep.subr.mxu0 0.0
    %145 = vmatpush1.msra.mxu0 %v66
    %146 = vmatprep.subr.mxu0 0.0
    %147 = vmatpush1.msra.mxu0 %v67
    %148 = vmatprep.subr.mxu0 0.0
    %149 = vmatpush1.msra.mxu0 %v68
    %150 = vmatprep.subr.mxu0 0.0
    %151 = vmatpush1.msra.mxu0 %v69
    %152 = vmatprep.subr.mxu0 0.0
    %153 = vmatpush1.msra.mxu0 %v70
    %154 = vmatprep.subr.mxu0 0.0
    %155 = vmatpush1.msra.mxu0 %v71
    %156 = vmatprep.subr.mxu0 0.0
    %157 = vmatpush1.msra.mxu0 %v72
    %158 = vmatprep.subr.mxu0 0.0
    %159 = vmatpush1.msra.mxu0 %v73
    %160 = vmatprep.subr.mxu0 0.0
    %161 = vmatpush1.msra.mxu0 %v74
    %162 = vmatprep.subr.mxu0 0.0
    %163 = vmatpush1.msra.mxu0 %v75
    %164 = vmatprep.subr.mxu0 0.0
    %165 = vmatpush1.msra.mxu0 %v76
    %166 = vmatprep.subr.mxu0 0.0
    %167 = vmatpush1.msra.mxu0 %v77
    %168 = vmatprep.subr.mxu0 0.0
    %169 = vmatpush1.msra.mxu0 %v78
    %170 = vmatprep.subr.mxu0 0.0
    %171 = vmatpush1.msra.mxu0 %v79
    %172 = vmatprep.subr.mxu0 0.0
    %173 = vmatpush1.msra.mxu0 %v80
    %174 = vmatprep.subr.mxu0 0.0
    %175 = vmatpush1.msra.mxu0 %v81
    %176 = vmatprep.subr.mxu0 0.0
    %177 = vmatpush1.msra.mxu0 %v82
    %178 = vmatprep.subr.mxu0 0.0
    %179 = vmatpush1.msra.mxu0 %v83
    %180 = vmatprep.mubr.f32.mxu0 %v49
    %181 = vmatmul.mubr.f32.gmra.mrb[0].mxu0 %v48
    %v182 = vpop.f32.mrb[0].mxu0
    %v183 = vadd.f32 0.0, %v182
    %v184 = vpop.f32.mrb[0].mxu0
    %185 = vdwg.mxu0
    %186 = vmatprep.subr.mxu0 0.0
    %187 = vmatpush1.msra.mxu0 %v84
    %188 = vmatprep.subr.mxu0 0.0
    %189 = vmatpush1.msra.mxu0 %v85
    %190 = vmatprep.subr.mxu0 0.0
    %191 = vmatpush1.msra.mxu0 %v86
    %192 = vmatprep.subr.mxu0 0.0
    %193 = vmatpush1.msra.mxu0 %v87
    %194 = vmatprep.subr.mxu0 0.0
    %195 = vmatpush1.msra.mxu0 %v88
    %196 = vmatprep.subr.mxu0 0.0
    %197 = vmatpush1.msra.mxu0 %v89
    %198 = vmatprep.subr.mxu0 0.0
    %199 = vmatpush1.msra.mxu0 %v90
    %200 = vmatprep.subr.mxu0 0.0
    %201 = vmatpush1.msra.mxu0 %v91
    %202 = vmatprep.subr.mxu0 0.0
    %203 = vmatpush1.msra.mxu0 %v92
    %204 = vmatprep.subr.mxu0 0.0
    %205 = vmatpush1.msra.mxu0 %v93
    %206 = vmatprep.subr.mxu0 0.0
    %207 = vmatpush1.msra.mxu0 %v94
    %208 = vmatprep.subr.mxu0 0.0
    %209 = vmatpush1.msra.mxu0 %v95
    %210 = vmatprep.subr.mxu0 0.0
    %211 = vmatpush1.msra.mxu0 %v96
    %212 = vmatprep.subr.mxu0 0.0
    %213 = vmatpush1.msra.mxu0 %v97
    %214 = vmatprep.subr.mxu0 0.0
    %215 = vmatpush1.msra.mxu0 %v98
    %216 = vmatprep.subr.mxu0 0.0
    %217 = vmatpush1.msra.mxu0 %v99
    %218 = vmatprep.subr.mxu0 0.0
    %219 = vmatpush1.msra.mxu0 %v100
    %220 = vmatprep.subr.mxu0 0.0
    %221 = vmatpush1.msra.mxu0 %v101
    %222 = vmatprep.subr.mxu0 0.0
    %223 = vmatpush1.msra.mxu0 %v102
    %224 = vmatprep.subr.mxu0 0.0
    %225 = vmatpush1.msra.mxu0 %v103
    %226 = vmatprep.subr.mxu0 0.0
    %227 = vmatpush1.msra.mxu0 %v104
    %228 = vmatprep.subr.mxu0 0.0
    %229 = vmatpush1.msra.mxu0 %v105
    %230 = vmatprep.subr.mxu0 0.0
    %231 = vmatpush1.msra.mxu0 %v106
    %232 = vmatprep.subr.mxu0 0.0
    %233 = vmatpush1.msra.mxu0 %v107
    %234 = vmatprep.subr.mxu0 0.0
    %235 = vmatpush1.msra.mxu0 %v108
    %236 = vmatprep.subr.mxu0 0.0
    %237 = vmatpush1.msra.mxu0 %v109
    %238 = vmatprep.subr.mxu0 0.0
    %239 = vmatpush1.msra.mxu0 %v110
    %240 = vmatprep.subr.mxu0 0.0
    %241 = vmatpush1.msra.mxu0 %v111
    %242 = vmatprep.subr.mxu0 0.0
    %243 = vmatpush1.msra.mxu0 %v112
    %244 = vmatprep.subr.mxu0 0.0
    %245 = vmatpush1.msra.mxu0 %v113
    %246 = vmatprep.subr.mxu0 0.0
    %247 = vmatpush1.msra.mxu0 %v114
    %248 = vmatprep.subr.mxu0 0.0
    %249 = vmatpush1.msra.mxu0 %v115
    %250 = vmatprep.mubr.f32.mxu0 %v51
    %251 = vmatmul.mubr.f32.gmra.mrb[0].mxu0 %v50
    %v252 = vpop.f32.mrb[0].mxu0
    %v253 = vadd.f32 %v183, %v252
    %v254 = vpop.f32.mrb[0].mxu0
    %255 = vdwg.mxu0
    %256 = vst [vmem:[#allocation10] sm:$0xff] %v253
    // Predicated region
    $region18: #{tpu_custom_call.1} parent=1 // pred_check
      _
    $region19: #{tpu_custom_call.1} parent=1 // pred_check_branch
      %258 = sbr.rel (0) target = $region21
    $region20: #{tpu_custom_call.1} parent=1 // pred_region
      %s260 = ssub.s32 128, 128
      %261 = vsyncadd [#allocation7], %s260
      %s263 = sshll.u32 [#allocation10], 4
      %s264 = int_to_ptr.vmem [resolvable:$true] %s263
      %266 = dma.vmem_to_hbm [thread:$0]  %s264, 128, %s4, [#allocation7]
    $region21: #{tpu_custom_call.1} parent=1 // pred_fallthru
      _
    // Predicated region
    $region22: #{tpu_custom_call.1} parent=1 // pred_check
      _
    $region23: #{tpu_custom_call.1} parent=1 // pred_check_branch
      %268 = sbr.rel (0) target = $region25
    $region24: #{tpu_custom_call.1} parent=1 // pred_region
      %269 = dma.done [#allocation7], 128
    $region25: #{tpu_custom_call.1} parent=1 // pred_fallthru
      _
    %270 = vsyncpa [#allocation6], 1
    %271 = vsyncpa [#allocation9], 1
    %272 = vsyncpa [#allocation7], 1

</llo_original>
